<compile_context>
chip_gen: v5e
topology: v5e:2x2
jax: 0.10.0
libtpu: 0.0.40
codegen_flags: <defaults>
</compile_context>

<pallas_src>
import jax
import jax.numpy as jnp
from jax.experimental import pallas as pl
from jax.experimental.pallas import tpu as pltpu

_LANES = 1024                     # fallback slab width (multiple of 128)
_MAX_BLOCK_COLS = 2048            # cap on lane-width per block (multiple of 128)
_BLOCK_BYTES = 2 * 1024 * 1024    # ~2 MiB per f32 block buffer


def _fermi_dirac_kernel(rt_ref, dist_ref, out_ref):
    # rt_ref lives in SMEM: rt_ref[0] = r, rt_ref[1] = 1/t
    r = rt_ref[0]
    inv_t = rt_ref[1]
    x = dist_ref[...].astype(jnp.float32)
    # sigmoid((r - x) * inv_t) == 1 / (exp((x - r)/t) + 1)
    out_ref[...] = jax.nn.sigmoid((r - x) * inv_t).astype(out_ref.dtype)


def _launch(x2d: jax.Array, rt: jax.Array, dtype) -> jax.Array:
    rows, cols = x2d.shape

    # Lane (last-dim) block size: full extent if small, else a multiple of 128.
    bc = cols if cols <= _MAX_BLOCK_COLS else _MAX_BLOCK_COLS
    # Row block size targeting ~_BLOCK_BYTES per buffer; multiple of 8 or full.
    br = max(8, (_BLOCK_BYTES // (bc * 4)) // 8 * 8)
    if br >= rows:
        br = rows                 # single full-extent row block (always legal)

    grid = (pl.cdiv(rows, br), pl.cdiv(cols, bc))

    return pl.pallas_call(
        _fermi_dirac_kernel,
        out_shape=jax.ShapeDtypeStruct((rows, cols), dtype),
        grid_spec=pltpu.PrefetchScalarGridSpec(
            num_scalar_prefetch=1,            # rt -> SMEM
            grid=grid,
            in_specs=[pl.BlockSpec((br, bc), lambda i, j, rt_ref: (i, j))],
            out_specs=pl.BlockSpec((br, bc), lambda i, j, rt_ref: (i, j)),
        ),
        compiler_params=pltpu.CompilerParams(
            dimension_semantics=("parallel", "parallel"),
            vmem_limit_bytes=32 * 1024 * 1024,
        ),
    )(rt, x2d)


def fermi_dirac_decoder(dist: jax.Array, r: float, t: float) -> jax.Array:
    """Elementwise Fermi-Dirac edge probability; `dist` may be any shape."""
    orig_shape = dist.shape
    dtype = dist.dtype
    total = dist.size
    rt = jnp.array([r, 1.0 / t], dtype=jnp.float32)

    if dist.ndim >= 2 and orig_shape[-1] % 128 == 0:
        # Fast path: last dim already lane-dense -> collapse leading dims only
        # (no padding, no extra HBM pass).
        cols = orig_shape[-1]
        rows = total // cols
        out2d = _launch(dist.reshape(rows, cols), rt, dtype)
        return out2d.reshape(orig_shape)

    # Fallback: flatten + pad tail once to a fixed lane-dense slab.
    cols = _LANES
    rows = pl.cdiv(total, cols)
    flat = dist.reshape(-1)
    pad = rows * cols - total
    if pad:
        flat = jnp.pad(flat, (0, pad))
    out2d = _launch(flat.reshape(rows, cols), rt, dtype)
    return out2d.reshape(-1)[:total].reshape(orig_shape)


if __name__ == "__main__":
    r, t = 2.0, 1.0  # decoder hyperparameters (fixed, as in the module)

    # Pairwise hyperbolic-distance style matrix -> zero-copy lane-dense path.
    key = jax.random.PRNGKey(0)
    dist_a = jax.random.uniform(key, (128, 256), dtype=jnp.float32,
                                minval=0.0, maxval=5.0)
    out_a = jax.block_until_ready(fermi_dirac_decoder(dist_a, r, t))
    ref_a = 1.0 / (jnp.exp((dist_a - r) / t) + 1.0)
    assert out_a.shape == dist_a.shape and out_a.dtype == dist_a.dtype
    assert jnp.allclose(out_a, ref_a, atol=1e-5, rtol=1e-5)

    # Ragged / non-lane-aligned input -> padded fallback path.
    key_b = jax.random.PRNGKey(0)
    dist_b = jax.random.uniform(key_b, (37, 53), dtype=jnp.float32,
                                minval=0.0, maxval=5.0)
    out_b = jax.block_until_ready(fermi_dirac_decoder(dist_b, r, t))
    ref_b = 1.0 / (jnp.exp((dist_b - r) / t) + 1.0)
    assert out_b.shape == dist_b.shape and out_b.dtype == dist_b.dtype
    assert jnp.allclose(out_b, ref_b, atol=1e-5, rtol=1e-5)

    print("KERNEL_OK")
</pallas_src>

<mosaic_0001>
module attributes {stable_mosaic.version = 11 : i64} {
  func.func @_fermi_dirac_kernel(%arg0: i32, %arg1: i32, %arg2: memref<2xf32, #tpu.memory_space<smem>>, %arg3: memref<128x256xf32, #tpu.memory_space<vmem>>, %arg4: memref<128x256xf32, #tpu.memory_space<vmem>>) attributes {dimension_semantics = [#tpu.dimension_semantics<parallel>, #tpu.dimension_semantics<parallel>], iteration_bounds = array<i64: 1, 1>, scalar_prefetch = 1 : i64, scratch_operands = 0 : i64, tpu.core_type = #tpu.core_type<tc>, window_params = [{transform_indices = @transform_0, window_bounds = array<i64: 128, 256>}, {transform_indices = @transform_1, window_bounds = array<i64: 128, 256>}]} {
    %c0 = arith.constant 0 : index
    %0 = memref.load %arg2[%c0] : memref<2xf32, #tpu.memory_space<smem>>
    %c1 = arith.constant 1 : index
    %1 = memref.load %arg2[%c1] : memref<2xf32, #tpu.memory_space<smem>>
    %c0_0 = arith.constant 0 : index
    %c0_1 = arith.constant 0 : index
    %2 = vector.load %arg3[%c0_0, %c0_1] : memref<128x256xf32, #tpu.memory_space<vmem>>, vector<128x256xf32>
    %3 = vector.broadcast %0 : f32 to vector<128x256xf32>
    %4 = arith.subf %3, %2 : vector<128x256xf32>
    %5 = vector.broadcast %1 : f32 to vector<128x256xf32>
    %6 = arith.mulf %4, %5 : vector<128x256xf32>
    %7 = arith.negf %6 : vector<128x256xf32>
    %8 = math.exp %7 : vector<128x256xf32>
    %cst = arith.constant 1.000000e+00 : f32
    %9 = vector.broadcast %cst : f32 to vector<128x256xf32>
    %10 = arith.addf %9, %8 : vector<128x256xf32>
    %11 = arith.divf %9, %10 : vector<128x256xf32>
    %c0_2 = arith.constant 0 : index
    %c0_3 = arith.constant 0 : index
    %12 = vector.load %arg4[%c0_2, %c0_3] : memref<128x256xf32, #tpu.memory_space<vmem>>, vector<128x256xf32>
    tpu.vector_store %arg4[%c0_2, %c0_3], %11 {strides = array<i32>} : memref<128x256xf32, #tpu.memory_space<vmem>>, vector<128x256xf32>,
    return
  }
  func.func @transform_0(%arg0: i32, %arg1: i32, %arg2: memref<2xf32, #tpu.memory_space<smem>>) -> (i32, i32) {
    %c0_i32 = arith.constant 0 : i32
    return %arg0, %arg1 : i32, i32
  }
  func.func @transform_1(%arg0: i32, %arg1: i32, %arg2: memref<2xf32, #tpu.memory_space<smem>>) -> (i32, i32) {
    %c0_i32 = arith.constant 0 : i32
    return %arg0, %arg1 : i32, i32
  }
}

</mosaic_0001>

<llo_original>
// kernel: tpu_custom_call.1
$region0: #{tpu_custom_call.1}
  #allocation0 [shape = 'u32[]', space=smem, size = 0x4, offset = 0x4, fixed_abs, tag = 'smem constant byte address 0x4 - core index']
  #allocation1 [shape = 'u32[72,128]{1,0:T(1,128)}', space=vmem, size = 0x9000, scoped, tag = 'internal scratch']
  #allocation2 [shape = 's32[1]{0}', space=sflag, size = 0x4, scoped, tag = 'scoped memory for tpu_custom_call.1']
  #allocation3 [shape = 'u8[512]{0}', space=smem, size = 0x200, scoped, tag = 'prefetched SMEM operand 0']
  %s0 = inlined_call_operand.hbm [shape: f32[2], index: 0, kind: input, shape index: {}]
  %s1 = inlined_call_operand.hbm [shape: f32[128,256], index: 1, kind: input, shape index: {}]
  %s2 = inlined_call_operand.hbm [shape: f32[128,256], index: 2, kind: output, shape index: {}]
  %s3 = sld [smem:[#allocation0]]
  $region18: #{tpu_custom_call.1} parent=0
    _
  %s5 = ssub.s32 1, %s3
  %s6 = scalar_select 0, %s5, %s3
  %s8 = sshll.u32 %s0, 4
  %s9 = int_to_ptr.hbm [resolvable:$true] %s8
  %11 = dma.hbm_to_smem %s9, 16, [#allocation3], [#allocation2]
  %13 = dma.done [#allocation2], 16
  %14 = sfence
  $region1: #{tpu_custom_call.1} parent=0
    #allocation4 [shape = 'u8[131072]{0}', space=vmem, size = 0x20000, scoped, tag = 'input window, operand 1, single buffered']
    #allocation5 [shape = 's32[1]{0}', space=sflag, size = 0x4, scoped, tag = 'scoped memory for tpu_custom_call.1']
    #allocation6 [shape = 's32[1]{0}', space=sflag, size = 0x4, scoped, tag = 'scoped memory for tpu_custom_call.1']
    #allocation7 [shape = 'u8[131072]{0}', space=vmem, size = 0x20000, scoped, tag = 'output window, operand 0, single buffered']
    %15 = vsyncpa [#allocation5], 0
    %16 = vsyncpa [#allocation6], 0
    // Predicated region
    $region2: #{tpu_custom_call.1} parent=1 // pred_check
      _
    $region3: #{tpu_custom_call.1} parent=1 // pred_check_branch
      %18 = sbr.rel (0) target = $region5
    $region4: #{tpu_custom_call.1} parent=1 // pred_region
      %20 = vsyncadd [#allocation5], 0
      %s21 = sshll.u32 %s1, 4
      %s22 = int_to_ptr.hbm [resolvable:$true] %s21
      %s23 = sshll.u32 [#allocation4], 4
      %s24 = int_to_ptr.vmem [resolvable:$true] %s23
      %29 = dma.hbm_to_vmem [thread:$0]  %s22, 4096, %s24, [#allocation5], 256, 256, 16
    $region5: #{tpu_custom_call.1} parent=1 // pred_fallthru
      _
    // Predicated region
    $region6: #{tpu_custom_call.1} parent=1 // pred_check
      _
    $region7: #{tpu_custom_call.1} parent=1 // pred_check_branch
      %31 = sbr.rel (0) target = $region9
    $region8: #{tpu_custom_call.1} parent=1 // pred_region
      %33 = dma.done [#allocation5], 4096
    $region9: #{tpu_custom_call.1} parent=1 // pred_fallthru
      _
    %s34 = sld [smem:[#allocation3]]
    %s35 = sld [smem:[#allocation3 + $0x1]]
    %v36 = vld [vmem:[#allocation4] sm:$0xff]
    %v37 = vld [vmem:[#allocation4 + $0x8] sm:$0xff]
    %v38 = vld [vmem:[#allocation4 + $0x10] sm:$0xff]
    %v39 = vld [vmem:[#allocation4 + $0x18] sm:$0xff]
    %v40 = vld [vmem:[#allocation4 + $0x20] sm:$0xff]
    %v41 = vld [vmem:[#allocation4 + $0x28] sm:$0xff]
    %v42 = vld [vmem:[#allocation4 + $0x30] sm:$0xff]
    %v43 = vld [vmem:[#allocation4 + $0x38] sm:$0xff]
    %v44 = vld [vmem:[#allocation4 + $0x40] sm:$0xff]
    %v45 = vld [vmem:[#allocation4 + $0x48] sm:$0xff]
    %v46 = vld [vmem:[#allocation4 + $0x50] sm:$0xff]
    %v47 = vld [vmem:[#allocation4 + $0x58] sm:$0xff]
    %v48 = vld [vmem:[#allocation4 + $0x60] sm:$0xff]
    %v49 = vld [vmem:[#allocation4 + $0x68] sm:$0xff]
    %v50 = vld [vmem:[#allocation4 + $0x70] sm:$0xff]
    %v51 = vld [vmem:[#allocation4 + $0x78] sm:$0xff]
    %v52 = vld [vmem:[#allocation4 + $0x80] sm:$0xff]
    %v53 = vld [vmem:[#allocation4 + $0x88] sm:$0xff]
    %v54 = vld [vmem:[#allocation4 + $0x90] sm:$0xff]
    %v55 = vld [vmem:[#allocation4 + $0x98] sm:$0xff]
    %v56 = vld [vmem:[#allocation4 + $0xa0] sm:$0xff]
    %v57 = vld [vmem:[#allocation4 + $0xa8] sm:$0xff]
    %v58 = vld [vmem:[#allocation4 + $0xb0] sm:$0xff]
    %v59 = vld [vmem:[#allocation4 + $0xb8] sm:$0xff]
    %v60 = vld [vmem:[#allocation4 + $0xc0] sm:$0xff]
    %v61 = vld [vmem:[#allocation4 + $0xc8] sm:$0xff]
    %v62 = vld [vmem:[#allocation4 + $0xd0] sm:$0xff]
    %v63 = vld [vmem:[#allocation4 + $0xd8] sm:$0xff]
    %v64 = vld [vmem:[#allocation4 + $0xe0] sm:$0xff]
    %v65 = vld [vmem:[#allocation4 + $0xe8] sm:$0xff]
    %v66 = vld [vmem:[#allocation4 + $0xf0] sm:$0xff]
    %v67 = vld [vmem:[#allocation4 + $0xf8] sm:$0xff]
    %v68 = vstv %s34
    %v69 = vsub.f32 %v68, %v36
    %v70 = vsub.f32 %v68, %v37
    %v71 = vsub.f32 %v68, %v38
    %v72 = vsub.f32 %v68, %v39
    %v73 = vsub.f32 %v68, %v40
    %v74 = vsub.f32 %v68, %v41
    %v75 = vsub.f32 %v68, %v42
    %v76 = vsub.f32 %v68, %v43
    %v77 = vsub.f32 %v68, %v44
    %v78 = vsub.f32 %v68, %v45
    %v79 = vsub.f32 %v68, %v46
    %v80 = vsub.f32 %v68, %v47
    %v81 = vsub.f32 %v68, %v48
    %v82 = vsub.f32 %v68, %v49
    %v83 = vsub.f32 %v68, %v50
    %v84 = vsub.f32 %v68, %v51
    %v85 = vsub.f32 %v68, %v52
    %v86 = vsub.f32 %v68, %v53
    %v87 = vsub.f32 %v68, %v54
    %v88 = vsub.f32 %v68, %v55
    %v89 = vsub.f32 %v68, %v56
    %v90 = vsub.f32 %v68, %v57
    %v91 = vsub.f32 %v68, %v58
    %v92 = vsub.f32 %v68, %v59
    %v93 = vsub.f32 %v68, %v60
    %v94 = vsub.f32 %v68, %v61
    %v95 = vsub.f32 %v68, %v62
    %v96 = vsub.f32 %v68, %v63
    %v97 = vsub.f32 %v68, %v64
    %v98 = vsub.f32 %v68, %v65
    %v99 = vsub.f32 %v68, %v66
    %v100 = vsub.f32 %v68, %v67
    %v101 = vstv %s35
    %v102 = vmul.f32 %v69, %v101
    %v103 = vmul.f32 %v70, %v101
    %v104 = vmul.f32 %v71, %v101
    %v105 = vmul.f32 %v72, %v101
    %v106 = vmul.f32 %v73, %v101
    %v107 = vmul.f32 %v74, %v101
    %v108 = vmul.f32 %v75, %v101
    %v109 = vmul.f32 %v76, %v101
    %v110 = vmul.f32 %v77, %v101
    %v111 = vmul.f32 %v78, %v101
    %v112 = vmul.f32 %v79, %v101
    %v113 = vmul.f32 %v80, %v101
    %v114 = vmul.f32 %v81, %v101
    %v115 = vmul.f32 %v82, %v101
    %v116 = vmul.f32 %v83, %v101
    %v117 = vmul.f32 %v84, %v101
    %v118 = vmul.f32 %v85, %v101
    %v119 = vmul.f32 %v86, %v101
    %v120 = vmul.f32 %v87, %v101
    %v121 = vmul.f32 %v88, %v101
    %v122 = vmul.f32 %v89, %v101
    %v123 = vmul.f32 %v90, %v101
    %v124 = vmul.f32 %v91, %v101
    %v125 = vmul.f32 %v92, %v101
    %v126 = vmul.f32 %v93, %v101
    %v127 = vmul.f32 %v94, %v101
    %v128 = vmul.f32 %v95, %v101
    %v129 = vmul.f32 %v96, %v101
    %v130 = vmul.f32 %v97, %v101
    %v131 = vmul.f32 %v98, %v101
    %v132 = vmul.f32 %v99, %v101
    %v133 = vmul.f32 %v100, %v101
    %v134 = vxor.u32 %v102, 2147483648
    %v135 = vxor.u32 %v103, 2147483648
    %v136 = vxor.u32 %v104, 2147483648
    %v137 = vxor.u32 %v105, 2147483648
    %v138 = vxor.u32 %v106, 2147483648
    %v139 = vxor.u32 %v107, 2147483648
    %v140 = vxor.u32 %v108, 2147483648
    %v141 = vxor.u32 %v109, 2147483648
    %v142 = vxor.u32 %v110, 2147483648
    %v143 = vxor.u32 %v111, 2147483648
    %v144 = vxor.u32 %v112, 2147483648
    %v145 = vxor.u32 %v113, 2147483648
    %v146 = vxor.u32 %v114, 2147483648
    %v147 = vxor.u32 %v115, 2147483648
    %v148 = vxor.u32 %v116, 2147483648
    %v149 = vxor.u32 %v117, 2147483648
    %v150 = vxor.u32 %v118, 2147483648
    %v151 = vxor.u32 %v119, 2147483648
    %v152 = vxor.u32 %v120, 2147483648
    %v153 = vxor.u32 %v121, 2147483648
    %v154 = vxor.u32 %v122, 2147483648
    %v155 = vxor.u32 %v123, 2147483648
    %v156 = vxor.u32 %v124, 2147483648
    %v157 = vxor.u32 %v125, 2147483648
    %v158 = vxor.u32 %v126, 2147483648
    %v159 = vxor.u32 %v127, 2147483648
    %v160 = vxor.u32 %v128, 2147483648
    %v161 = vxor.u32 %v129, 2147483648
    %v162 = vxor.u32 %v130, 2147483648
    %v163 = vxor.u32 %v131, 2147483648
    %v164 = vxor.u32 %v132, 2147483648
    %v165 = vxor.u32 %v133, 2147483648
    %v166 = vmul.f32 %v134, 1.442695
    %v167 = vpow.pop %v166
    %v168 = vmul.f32 %v135, 1.442695
    %v169 = vpow.pop %v168
    %v170 = vmul.f32 %v136, 1.442695
    %v171 = vpow.pop %v170
    %v172 = vmul.f32 %v137, 1.442695
    %v173 = vpow.pop %v172
    %v174 = vmul.f32 %v138, 1.442695
    %v175 = vpow.pop %v174
    %v176 = vmul.f32 %v139, 1.442695
    %v177 = vpow.pop %v176
    %v178 = vmul.f32 %v140, 1.442695
    %v179 = vpow.pop %v178
    %v180 = vmul.f32 %v141, 1.442695
    %v181 = vpow.pop %v180
    %v182 = vmul.f32 %v142, 1.442695
    %v183 = vpow.pop %v182
    %v184 = vmul.f32 %v143, 1.442695
    %v185 = vpow.pop %v184
    %v186 = vmul.f32 %v144, 1.442695
    %v187 = vpow.pop %v186
    %v188 = vmul.f32 %v145, 1.442695
    %v189 = vpow.pop %v188
    %v190 = vmul.f32 %v146, 1.442695
    %v191 = vpow.pop %v190
    %v192 = vmul.f32 %v147, 1.442695
    %v193 = vpow.pop %v192
    %v194 = vmul.f32 %v148, 1.442695
    %v195 = vpow.pop %v194
    %v196 = vmul.f32 %v149, 1.442695
    %v197 = vpow.pop %v196
    %v198 = vmul.f32 %v150, 1.442695
    %v199 = vpow.pop %v198
    %v200 = vmul.f32 %v151, 1.442695
    %v201 = vpow.pop %v200
    %v202 = vmul.f32 %v152, 1.442695
    %v203 = vpow.pop %v202
    %v204 = vmul.f32 %v153, 1.442695
    %v205 = vpow.pop %v204
    %v206 = vmul.f32 %v154, 1.442695
    %v207 = vpow.pop %v206
    %v208 = vmul.f32 %v155, 1.442695
    %v209 = vpow.pop %v208
    %v210 = vmul.f32 %v156, 1.442695
    %v211 = vpow.pop %v210
    %v212 = vmul.f32 %v157, 1.442695
    %v213 = vpow.pop %v212
    %v214 = vmul.f32 %v158, 1.442695
    %v215 = vpow.pop %v214
    %v216 = vmul.f32 %v159, 1.442695
    %v217 = vpow.pop %v216
    %v218 = vmul.f32 %v160, 1.442695
    %v219 = vpow.pop %v218
    %v220 = vmul.f32 %v161, 1.442695
    %v221 = vpow.pop %v220
    %v222 = vmul.f32 %v162, 1.442695
    %v223 = vpow.pop %v222
    %v224 = vmul.f32 %v163, 1.442695
    %v225 = vpow.pop %v224
    %v226 = vmul.f32 %v164, 1.442695
    %v227 = vpow.pop %v226
    %v228 = vmul.f32 %v165, 1.442695
    %v229 = vpow.pop %v228
    %v230 = vadd.f32 %v167, 1.0
    %v231 = vadd.f32 %v169, 1.0
    %v232 = vadd.f32 %v171, 1.0
    %v233 = vadd.f32 %v173, 1.0
    %v234 = vadd.f32 %v175, 1.0
    %v235 = vadd.f32 %v177, 1.0
    %v236 = vadd.f32 %v179, 1.0
    %v237 = vadd.f32 %v181, 1.0
    %v238 = vadd.f32 %v183, 1.0
    %v239 = vadd.f32 %v185, 1.0
    %v240 = vadd.f32 %v187, 1.0
    %v241 = vadd.f32 %v189, 1.0
    %v242 = vadd.f32 %v191, 1.0
    %v243 = vadd.f32 %v193, 1.0
    %v244 = vadd.f32 %v195, 1.0
    %v245 = vadd.f32 %v197, 1.0
    %v246 = vadd.f32 %v199, 1.0
    %v247 = vadd.f32 %v201, 1.0
    %v248 = vadd.f32 %v203, 1.0
    %v249 = vadd.f32 %v205, 1.0
    %v250 = vadd.f32 %v207, 1.0
    %v251 = vadd.f32 %v209, 1.0
    %v252 = vadd.f32 %v211, 1.0
    %v253 = vadd.f32 %v213, 1.0
    %v254 = vadd.f32 %v215, 1.0
    %v255 = vadd.f32 %v217, 1.0
    %v256 = vadd.f32 %v219, 1.0
    %v257 = vadd.f32 %v221, 1.0
    %v258 = vadd.f32 %v223, 1.0
    %v259 = vadd.f32 %v225, 1.0
    %v260 = vadd.f32 %v227, 1.0
    %v261 = vadd.f32 %v229, 1.0
    %v262 = vrcp.pop %v230
    %v263 = vmul.f32 %v230, %v262
    %v264 = vsub.f32 1.0, %v263
    %v265 = vmul.f32 %v262, %v264
    %v266 = vadd.f32 %v262, %v265
    %vm267 = vweird.f32 %v230
    %vm268 = vweird.f32 %v262
    %vm269 = vmor %vm267, %vm268
    %v270 = vsel %vm269, %v262, %v266
    %v271 = vand.u32 2147483647, %v230
    %vm272 = vcmp.eq.f32.partialorder %v271, 8.507059e+37
    %v273 = vand.u32 %v230, 2147483648
    %v274 = vor.u32 1.1754944e-38, %v273
    %v275 = vsel %vm272, %v274, %v270
    %v276 = vmul.f32 1.0, %v275
    %v277 = vrcp.pop %v231
    %v278 = vmul.f32 %v231, %v277
    %v279 = vsub.f32 1.0, %v278
    %v280 = vmul.f32 %v277, %v279
    %v281 = vadd.f32 %v277, %v280
    %vm282 = vweird.f32 %v231
    %vm283 = vweird.f32 %v277
    %vm284 = vmor %vm282, %vm283
    %v285 = vsel %vm284, %v277, %v281
    %v286 = vand.u32 2147483647, %v231
    %vm287 = vcmp.eq.f32.partialorder %v286, 8.507059e+37
    %v288 = vand.u32 %v231, 2147483648
    %v289 = vor.u32 1.1754944e-38, %v288
    %v290 = vsel %vm287, %v289, %v285
    %v291 = vmul.f32 1.0, %v290
    %v292 = vrcp.pop %v232
    %v293 = vmul.f32 %v232, %v292
    %v294 = vsub.f32 1.0, %v293
    %v295 = vmul.f32 %v292, %v294
    %v296 = vadd.f32 %v292, %v295
    %vm297 = vweird.f32 %v232
    %vm298 = vweird.f32 %v292
    %vm299 = vmor %vm297, %vm298
    %v300 = vsel %vm299, %v292, %v296
    %v301 = vand.u32 2147483647, %v232
    %vm302 = vcmp.eq.f32.partialorder %v301, 8.507059e+37
    %v303 = vand.u32 %v232, 2147483648
    %v304 = vor.u32 1.1754944e-38, %v303
    %v305 = vsel %vm302, %v304, %v300
    %v306 = vmul.f32 1.0, %v305
    %v307 = vrcp.pop %v233
    %v308 = vmul.f32 %v233, %v307
    %v309 = vsub.f32 1.0, %v308
    %v310 = vmul.f32 %v307, %v309
    %v311 = vadd.f32 %v307, %v310
    %vm312 = vweird.f32 %v233
    %vm313 = vweird.f32 %v307
    %vm314 = vmor %vm312, %vm313
    %v315 = vsel %vm314, %v307, %v311
    %v316 = vand.u32 2147483647, %v233
    %vm317 = vcmp.eq.f32.partialorder %v316, 8.507059e+37
    %v318 = vand.u32 %v233, 2147483648
    %v319 = vor.u32 1.1754944e-38, %v318
    %v320 = vsel %vm317, %v319, %v315
    %v321 = vmul.f32 1.0, %v320
    %v322 = vrcp.pop %v234
    %v323 = vmul.f32 %v234, %v322
    %v324 = vsub.f32 1.0, %v323
    %v325 = vmul.f32 %v322, %v324
    %v326 = vadd.f32 %v322, %v325
    %vm327 = vweird.f32 %v234
    %vm328 = vweird.f32 %v322
    %vm329 = vmor %vm327, %vm328
    %v330 = vsel %vm329, %v322, %v326
    %v331 = vand.u32 2147483647, %v234
    %vm332 = vcmp.eq.f32.partialorder %v331, 8.507059e+37
    %v333 = vand.u32 %v234, 2147483648
    %v334 = vor.u32 1.1754944e-38, %v333
    %v335 = vsel %vm332, %v334, %v330
    %v336 = vmul.f32 1.0, %v335
    %v337 = vrcp.pop %v235
    %v338 = vmul.f32 %v235, %v337
    %v339 = vsub.f32 1.0, %v338
    %v340 = vmul.f32 %v337, %v339
    %v341 = vadd.f32 %v337, %v340
    %vm342 = vweird.f32 %v235
    %vm343 = vweird.f32 %v337
    %vm344 = vmor %vm342, %vm343
    %v345 = vsel %vm344, %v337, %v341
    %v346 = vand.u32 2147483647, %v235
    %vm347 = vcmp.eq.f32.partialorder %v346, 8.507059e+37
    %v348 = vand.u32 %v235, 2147483648
    %v349 = vor.u32 1.1754944e-38, %v348
    %v350 = vsel %vm347, %v349, %v345
    %v351 = vmul.f32 1.0, %v350
    %v352 = vrcp.pop %v236
    %v353 = vmul.f32 %v236, %v352
    %v354 = vsub.f32 1.0, %v353
    %v355 = vmul.f32 %v352, %v354
    %v356 = vadd.f32 %v352, %v355
    %vm357 = vweird.f32 %v236
    %vm358 = vweird.f32 %v352
    %vm359 = vmor %vm357, %vm358
    %v360 = vsel %vm359, %v352, %v356
    %v361 = vand.u32 2147483647, %v236
    %vm362 = vcmp.eq.f32.partialorder %v361, 8.507059e+37
    %v363 = vand.u32 %v236, 2147483648
    %v364 = vor.u32 1.1754944e-38, %v363
    %v365 = vsel %vm362, %v364, %v360
    %v366 = vmul.f32 1.0, %v365
    %v367 = vrcp.pop %v237
    %v368 = vmul.f32 %v237, %v367
    %v369 = vsub.f32 1.0, %v368
    %v370 = vmul.f32 %v367, %v369
    %v371 = vadd.f32 %v367, %v370
    %vm372 = vweird.f32 %v237
    %vm373 = vweird.f32 %v367
    %vm374 = vmor %vm372, %vm373
    %v375 = vsel %vm374, %v367, %v371
    %v376 = vand.u32 2147483647, %v237
    %vm377 = vcmp.eq.f32.partialorder %v376, 8.507059e+37
    %v378 = vand.u32 %v237, 2147483648
    %v379 = vor.u32 1.1754944e-38, %v378
    %v380 = vsel %vm377, %v379, %v375
    %v381 = vmul.f32 1.0, %v380
    %v382 = vrcp.pop %v238
    %v383 = vmul.f32 %v238, %v382
    %v384 = vsub.f32 1.0, %v383
    %v385 = vmul.f32 %v382, %v384
    %v386 = vadd.f32 %v382, %v385
    %vm387 = vweird.f32 %v238
    %vm388 = vweird.f32 %v382
    %vm389 = vmor %vm387, %vm388
    %v390 = vsel %vm389, %v382, %v386
    %v391 = vand.u32 2147483647, %v238
    %vm392 = vcmp.eq.f32.partialorder %v391, 8.507059e+37
    %v393 = vand.u32 %v238, 2147483648
    %v394 = vor.u32 1.1754944e-38, %v393
    %v395 = vsel %vm392, %v394, %v390
    %v396 = vmul.f32 1.0, %v395
    %v397 = vrcp.pop %v239
    %v398 = vmul.f32 %v239, %v397
    %v399 = vsub.f32 1.0, %v398
    %v400 = vmul.f32 %v397, %v399
    %v401 = vadd.f32 %v397, %v400
    %vm402 = vweird.f32 %v239
    %vm403 = vweird.f32 %v397
    %vm404 = vmor %vm402, %vm403
    %v405 = vsel %vm404, %v397, %v401
    %v406 = vand.u32 2147483647, %v239
    %vm407 = vcmp.eq.f32.partialorder %v406, 8.507059e+37
    %v408 = vand.u32 %v239, 2147483648
    %v409 = vor.u32 1.1754944e-38, %v408
    %v410 = vsel %vm407, %v409, %v405
    %v411 = vmul.f32 1.0, %v410
    %v412 = vrcp.pop %v240
    %v413 = vmul.f32 %v240, %v412
    %v414 = vsub.f32 1.0, %v413
    %v415 = vmul.f32 %v412, %v414
    %v416 = vadd.f32 %v412, %v415
    %vm417 = vweird.f32 %v240
    %vm418 = vweird.f32 %v412
    %vm419 = vmor %vm417, %vm418
    %v420 = vsel %vm419, %v412, %v416
    %v421 = vand.u32 2147483647, %v240
    %vm422 = vcmp.eq.f32.partialorder %v421, 8.507059e+37
    %v423 = vand.u32 %v240, 2147483648
    %v424 = vor.u32 1.1754944e-38, %v423
    %v425 = vsel %vm422, %v424, %v420
    %v426 = vmul.f32 1.0, %v425
    %v427 = vrcp.pop %v241
    %v428 = vmul.f32 %v241, %v427
    %v429 = vsub.f32 1.0, %v428
    %v430 = vmul.f32 %v427, %v429
    %v431 = vadd.f32 %v427, %v430
    %vm432 = vweird.f32 %v241
    %vm433 = vweird.f32 %v427
    %vm434 = vmor %vm432, %vm433
    %v435 = vsel %vm434, %v427, %v431
    %v436 = vand.u32 2147483647, %v241
    %vm437 = vcmp.eq.f32.partialorder %v436, 8.507059e+37
    %v438 = vand.u32 %v241, 2147483648
    %v439 = vor.u32 1.1754944e-38, %v438
    %v440 = vsel %vm437, %v439, %v435
    %v441 = vmul.f32 1.0, %v440
    %v442 = vrcp.pop %v242
    %v443 = vmul.f32 %v242, %v442
    %v444 = vsub.f32 1.0, %v443
    %v445 = vmul.f32 %v442, %v444
    %v446 = vadd.f32 %v442, %v445
    %vm447 = vweird.f32 %v242
    %vm448 = vweird.f32 %v442
    %vm449 = vmor %vm447, %vm448
    %v450 = vsel %vm449, %v442, %v446
    %v451 = vand.u32 2147483647, %v242
    %vm452 = vcmp.eq.f32.partialorder %v451, 8.507059e+37
    %v453 = vand.u32 %v242, 2147483648
    %v454 = vor.u32 1.1754944e-38, %v453
    %v455 = vsel %vm452, %v454, %v450
    %v456 = vmul.f32 1.0, %v455
    %v457 = vrcp.pop %v243
    %v458 = vmul.f32 %v243, %v457
    %v459 = vsub.f32 1.0, %v458
    %v460 = vmul.f32 %v457, %v459
    %v461 = vadd.f32 %v457, %v460
    %vm462 = vweird.f32 %v243
    %vm463 = vweird.f32 %v457
    %vm464 = vmor %vm462, %vm463
    %v465 = vsel %vm464, %v457, %v461
    %v466 = vand.u32 2147483647, %v243
    %vm467 = vcmp.eq.f32.partialorder %v466, 8.507059e+37
    %v468 = vand.u32 %v243, 2147483648
    %v469 = vor.u32 1.1754944e-38, %v468
    %v470 = vsel %vm467, %v469, %v465
    %v471 = vmul.f32 1.0, %v470
    %v472 = vrcp.pop %v244
    %v473 = vmul.f32 %v244, %v472
    %v474 = vsub.f32 1.0, %v473
    %v475 = vmul.f32 %v472, %v474
    %v476 = vadd.f32 %v472, %v475
    %vm477 = vweird.f32 %v244
    %vm478 = vweird.f32 %v472
    %vm479 = vmor %vm477, %vm478
    %v480 = vsel %vm479, %v472, %v476
    %v481 = vand.u32 2147483647, %v244
    %vm482 = vcmp.eq.f32.partialorder %v481, 8.507059e+37
    %v483 = vand.u32 %v244, 2147483648
    %v484 = vor.u32 1.1754944e-38, %v483
    %v485 = vsel %vm482, %v484, %v480
    %v486 = vmul.f32 1.0, %v485
    %v487 = vrcp.pop %v245
    %v488 = vmul.f32 %v245, %v487
    %v489 = vsub.f32 1.0, %v488
    %v490 = vmul.f32 %v487, %v489
    %v491 = vadd.f32 %v487, %v490
    %vm492 = vweird.f32 %v245
    %vm493 = vweird.f32 %v487
    %vm494 = vmor %vm492, %vm493
    %v495 = vsel %vm494, %v487, %v491
    %v496 = vand.u32 2147483647, %v245
    %vm497 = vcmp.eq.f32.partialorder %v496, 8.507059e+37
    %v498 = vand.u32 %v245, 2147483648
    %v499 = vor.u32 1.1754944e-38, %v498
    %v500 = vsel %vm497, %v499, %v495
    %v501 = vmul.f32 1.0, %v500
    %v502 = vrcp.pop %v246
    %v503 = vmul.f32 %v246, %v502
    %v504 = vsub.f32 1.0, %v503
    %v505 = vmul.f32 %v502, %v504
    %v506 = vadd.f32 %v502, %v505
    %vm507 = vweird.f32 %v246
    %vm508 = vweird.f32 %v502
    %vm509 = vmor %vm507, %vm508
    %v510 = vsel %vm509, %v502, %v506
    %v511 = vand.u32 2147483647, %v246
    %vm512 = vcmp.eq.f32.partialorder %v511, 8.507059e+37
    %v513 = vand.u32 %v246, 2147483648
    %v514 = vor.u32 1.1754944e-38, %v513
    %v515 = vsel %vm512, %v514, %v510
    %v516 = vmul.f32 1.0, %v515
    %v517 = vrcp.pop %v247
    %v518 = vmul.f32 %v247, %v517
    %v519 = vsub.f32 1.0, %v518
    %v520 = vmul.f32 %v517, %v519
    %v521 = vadd.f32 %v517, %v520
    %vm522 = vweird.f32 %v247
    %vm523 = vweird.f32 %v517
    %vm524 = vmor %vm522, %vm523
    %v525 = vsel %vm524, %v517, %v521
    %v526 = vand.u32 2147483647, %v247
    %vm527 = vcmp.eq.f32.partialorder %v526, 8.507059e+37
    %v528 = vand.u32 %v247, 2147483648
    %v529 = vor.u32 1.1754944e-38, %v528
    %v530 = vsel %vm527, %v529, %v525
    %v531 = vmul.f32 1.0, %v530
    %v532 = vrcp.pop %v248
    %v533 = vmul.f32 %v248, %v532
    %v534 = vsub.f32 1.0, %v533
    %v535 = vmul.f32 %v532, %v534
    %v536 = vadd.f32 %v532, %v535
    %vm537 = vweird.f32 %v248
    %vm538 = vweird.f32 %v532
    %vm539 = vmor %vm537, %vm538
    %v540 = vsel %vm539, %v532, %v536
    %v541 = vand.u32 2147483647, %v248
    %vm542 = vcmp.eq.f32.partialorder %v541, 8.507059e+37
    %v543 = vand.u32 %v248, 2147483648
    %v544 = vor.u32 1.1754944e-38, %v543
    %v545 = vsel %vm542, %v544, %v540
    %v546 = vmul.f32 1.0, %v545
    %v547 = vrcp.pop %v249
    %v548 = vmul.f32 %v249, %v547
    %v549 = vsub.f32 1.0, %v548
    %v550 = vmul.f32 %v547, %v549
    %v551 = vadd.f32 %v547, %v550
    %vm552 = vweird.f32 %v249
    %vm553 = vweird.f32 %v547
    %vm554 = vmor %vm552, %vm553
    %v555 = vsel %vm554, %v547, %v551
    %v556 = vand.u32 2147483647, %v249
    %vm557 = vcmp.eq.f32.partialorder %v556, 8.507059e+37
    %v558 = vand.u32 %v249, 2147483648
    %v559 = vor.u32 1.1754944e-38, %v558
    %v560 = vsel %vm557, %v559, %v555
    %v561 = vmul.f32 1.0, %v560
    %v562 = vrcp.pop %v250
    %v563 = vmul.f32 %v250, %v562
    %v564 = vsub.f32 1.0, %v563
    %v565 = vmul.f32 %v562, %v564
    %v566 = vadd.f32 %v562, %v565
    %vm567 = vweird.f32 %v250
    %vm568 = vweird.f32 %v562
    %vm569 = vmor %vm567, %vm568
    %v570 = vsel %vm569, %v562, %v566
    %v571 = vand.u32 2147483647, %v250
    %vm572 = vcmp.eq.f32.partialorder %v571, 8.507059e+37
    %v573 = vand.u32 %v250, 2147483648
    %v574 = vor.u32 1.1754944e-38, %v573
    %v575 = vsel %vm572, %v574, %v570
    %v576 = vmul.f32 1.0, %v575
    %v577 = vrcp.pop %v251
    %v578 = vmul.f32 %v251, %v577
    %v579 = vsub.f32 1.0, %v578
    %v580 = vmul.f32 %v577, %v579
    %v581 = vadd.f32 %v577, %v580
    %vm582 = vweird.f32 %v251
    %vm583 = vweird.f32 %v577
    %vm584 = vmor %vm582, %vm583
    %v585 = vsel %vm584, %v577, %v581
    %v586 = vand.u32 2147483647, %v251
    %vm587 = vcmp.eq.f32.partialorder %v586, 8.507059e+37
    %v588 = vand.u32 %v251, 2147483648
    %v589 = vor.u32 1.1754944e-38, %v588
    %v590 = vsel %vm587, %v589, %v585
    %v591 = vmul.f32 1.0, %v590
    %v592 = vrcp.pop %v252
    %v593 = vmul.f32 %v252, %v592
    %v594 = vsub.f32 1.0, %v593
    %v595 = vmul.f32 %v592, %v594
    %v596 = vadd.f32 %v592, %v595
    %vm597 = vweird.f32 %v252
    %vm598 = vweird.f32 %v592
    %vm599 = vmor %vm597, %vm598
    %v600 = vsel %vm599, %v592, %v596
    %v601 = vand.u32 2147483647, %v252
    %vm602 = vcmp.eq.f32.partialorder %v601, 8.507059e+37
    %v603 = vand.u32 %v252, 2147483648
    %v604 = vor.u32 1.1754944e-38, %v603
    %v605 = vsel %vm602, %v604, %v600
    %v606 = vmul.f32 1.0, %v605
    %v607 = vrcp.pop %v253
    %v608 = vmul.f32 %v253, %v607
    %v609 = vsub.f32 1.0, %v608
    %v610 = vmul.f32 %v607, %v609
    %v611 = vadd.f32 %v607, %v610
    %vm612 = vweird.f32 %v253
    %vm613 = vweird.f32 %v607
    %vm614 = vmor %vm612, %vm613
    %v615 = vsel %vm614, %v607, %v611
    %v616 = vand.u32 2147483647, %v253
    %vm617 = vcmp.eq.f32.partialorder %v616, 8.507059e+37
    %v618 = vand.u32 %v253, 2147483648
    %v619 = vor.u32 1.1754944e-38, %v618
    %v620 = vsel %vm617, %v619, %v615
    %v621 = vmul.f32 1.0, %v620
    %v622 = vrcp.pop %v254
    %v623 = vmul.f32 %v254, %v622
    %v624 = vsub.f32 1.0, %v623
    %v625 = vmul.f32 %v622, %v624
    %v626 = vadd.f32 %v622, %v625
    %vm627 = vweird.f32 %v254
    %vm628 = vweird.f32 %v622
    %vm629 = vmor %vm627, %vm628
    %v630 = vsel %vm629, %v622, %v626
    %v631 = vand.u32 2147483647, %v254
    %vm632 = vcmp.eq.f32.partialorder %v631, 8.507059e+37
    %v633 = vand.u32 %v254, 2147483648
    %v634 = vor.u32 1.1754944e-38, %v633
    %v635 = vsel %vm632, %v634, %v630
    %v636 = vmul.f32 1.0, %v635
    %v637 = vrcp.pop %v255
    %v638 = vmul.f32 %v255, %v637
    %v639 = vsub.f32 1.0, %v638
    %v640 = vmul.f32 %v637, %v639
    %v641 = vadd.f32 %v637, %v640
    %vm642 = vweird.f32 %v255
    %vm643 = vweird.f32 %v637
    %vm644 = vmor %vm642, %vm643
    %v645 = vsel %vm644, %v637, %v641
    %v646 = vand.u32 2147483647, %v255
    %vm647 = vcmp.eq.f32.partialorder %v646, 8.507059e+37
    %v648 = vand.u32 %v255, 2147483648
    %v649 = vor.u32 1.1754944e-38, %v648
    %v650 = vsel %vm647, %v649, %v645
    %v651 = vmul.f32 1.0, %v650
    %v652 = vrcp.pop %v256
    %v653 = vmul.f32 %v256, %v652
    %v654 = vsub.f32 1.0, %v653
    %v655 = vmul.f32 %v652, %v654
    %v656 = vadd.f32 %v652, %v655
    %vm657 = vweird.f32 %v256
    %vm658 = vweird.f32 %v652
    %vm659 = vmor %vm657, %vm658
    %v660 = vsel %vm659, %v652, %v656
    %v661 = vand.u32 2147483647, %v256
    %vm662 = vcmp.eq.f32.partialorder %v661, 8.507059e+37
    %v663 = vand.u32 %v256, 2147483648
    %v664 = vor.u32 1.1754944e-38, %v663
    %v665 = vsel %vm662, %v664, %v660
    %v666 = vmul.f32 1.0, %v665
    %v667 = vrcp.pop %v257
    %v668 = vmul.f32 %v257, %v667
    %v669 = vsub.f32 1.0, %v668
    %v670 = vmul.f32 %v667, %v669
    %v671 = vadd.f32 %v667, %v670
    %vm672 = vweird.f32 %v257
    %vm673 = vweird.f32 %v667
    %vm674 = vmor %vm672, %vm673
    %v675 = vsel %vm674, %v667, %v671
    %v676 = vand.u32 2147483647, %v257
    %vm677 = vcmp.eq.f32.partialorder %v676, 8.507059e+37
    %v678 = vand.u32 %v257, 2147483648
    %v679 = vor.u32 1.1754944e-38, %v678
    %v680 = vsel %vm677, %v679, %v675
    %v681 = vmul.f32 1.0, %v680
    %v682 = vrcp.pop %v258
    %v683 = vmul.f32 %v258, %v682
    %v684 = vsub.f32 1.0, %v683
    %v685 = vmul.f32 %v682, %v684
    %v686 = vadd.f32 %v682, %v685
    %vm687 = vweird.f32 %v258
    %vm688 = vweird.f32 %v682
    %vm689 = vmor %vm687, %vm688
    %v690 = vsel %vm689, %v682, %v686
    %v691 = vand.u32 2147483647, %v258
    %vm692 = vcmp.eq.f32.partialorder %v691, 8.507059e+37
    %v693 = vand.u32 %v258, 2147483648
    %v694 = vor.u32 1.1754944e-38, %v693
    %v695 = vsel %vm692, %v694, %v690
    %v696 = vmul.f32 1.0, %v695
    %v697 = vrcp.pop %v259
    %v698 = vmul.f32 %v259, %v697
    %v699 = vsub.f32 1.0, %v698
    %v700 = vmul.f32 %v697, %v699
    %v701 = vadd.f32 %v697, %v700
    %vm702 = vweird.f32 %v259
    %vm703 = vweird.f32 %v697
    %vm704 = vmor %vm702, %vm703
    %v705 = vsel %vm704, %v697, %v701
    %v706 = vand.u32 2147483647, %v259
    %vm707 = vcmp.eq.f32.partialorder %v706, 8.507059e+37
    %v708 = vand.u32 %v259, 2147483648
    %v709 = vor.u32 1.1754944e-38, %v708
    %v710 = vsel %vm707, %v709, %v705
    %v711 = vmul.f32 1.0, %v710
    %v712 = vrcp.pop %v260
    %v713 = vmul.f32 %v260, %v712
    %v714 = vsub.f32 1.0, %v713
    %v715 = vmul.f32 %v712, %v714
    %v716 = vadd.f32 %v712, %v715
    %vm717 = vweird.f32 %v260
    %vm718 = vweird.f32 %v712
    %vm719 = vmor %vm717, %vm718
    %v720 = vsel %vm719, %v712, %v716
    %v721 = vand.u32 2147483647, %v260
    %vm722 = vcmp.eq.f32.partialorder %v721, 8.507059e+37
    %v723 = vand.u32 %v260, 2147483648
    %v724 = vor.u32 1.1754944e-38, %v723
    %v725 = vsel %vm722, %v724, %v720
    %v726 = vmul.f32 1.0, %v725
    %v727 = vrcp.pop %v261
    %v728 = vmul.f32 %v261, %v727
    %v729 = vsub.f32 1.0, %v728
    %v730 = vmul.f32 %v727, %v729
    %v731 = vadd.f32 %v727, %v730
    %vm732 = vweird.f32 %v261
    %vm733 = vweird.f32 %v727
    %vm734 = vmor %vm732, %vm733
    %v735 = vsel %vm734, %v727, %v731
    %v736 = vand.u32 2147483647, %v261
    %vm737 = vcmp.eq.f32.partialorder %v736, 8.507059e+37
    %v738 = vand.u32 %v261, 2147483648
    %v739 = vor.u32 1.1754944e-38, %v738
    %v740 = vsel %vm737, %v739, %v735
    %v741 = vmul.f32 1.0, %v740
    %742 = vst [vmem:[#allocation7] sm:$0xff] %v276
    %743 = vst [vmem:[#allocation7 + $0x8] sm:$0xff] %v291
    %744 = vst [vmem:[#allocation7 + $0x10] sm:$0xff] %v306
    %745 = vst [vmem:[#allocation7 + $0x18] sm:$0xff] %v321
    %746 = vst [vmem:[#allocation7 + $0x20] sm:$0xff] %v336
    %747 = vst [vmem:[#allocation7 + $0x28] sm:$0xff] %v351
    %748 = vst [vmem:[#allocation7 + $0x30] sm:$0xff] %v366
    %749 = vst [vmem:[#allocation7 + $0x38] sm:$0xff] %v381
    %750 = vst [vmem:[#allocation7 + $0x40] sm:$0xff] %v396
    %751 = vst [vmem:[#allocation7 + $0x48] sm:$0xff] %v411
    %752 = vst [vmem:[#allocation7 + $0x50] sm:$0xff] %v426
    %753 = vst [vmem:[#allocation7 + $0x58] sm:$0xff] %v441
    %754 = vst [vmem:[#allocation7 + $0x60] sm:$0xff] %v456
    %755 = vst [vmem:[#allocation7 + $0x68] sm:$0xff] %v471
    %756 = vst [vmem:[#allocation7 + $0x70] sm:$0xff] %v486
    %757 = vst [vmem:[#allocation7 + $0x78] sm:$0xff] %v501
    %758 = vst [vmem:[#allocation7 + $0x80] sm:$0xff] %v516
    %759 = vst [vmem:[#allocation7 + $0x88] sm:$0xff] %v531
    %760 = vst [vmem:[#allocation7 + $0x90] sm:$0xff] %v546
    %761 = vst [vmem:[#allocation7 + $0x98] sm:$0xff] %v561
    %762 = vst [vmem:[#allocation7 + $0xa0] sm:$0xff] %v576
    %763 = vst [vmem:[#allocation7 + $0xa8] sm:$0xff] %v591
    %764 = vst [vmem:[#allocation7 + $0xb0] sm:$0xff] %v606
    %765 = vst [vmem:[#allocation7 + $0xb8] sm:$0xff] %v621
    %766 = vst [vmem:[#allocation7 + $0xc0] sm:$0xff] %v636
    %767 = vst [vmem:[#allocation7 + $0xc8] sm:$0xff] %v651
    %768 = vst [vmem:[#allocation7 + $0xd0] sm:$0xff] %v666
    %769 = vst [vmem:[#allocation7 + $0xd8] sm:$0xff] %v681
    %770 = vst [vmem:[#allocation7 + $0xe0] sm:$0xff] %v696
    %771 = vst [vmem:[#allocation7 + $0xe8] sm:$0xff] %v711
    %772 = vst [vmem:[#allocation7 + $0xf0] sm:$0xff] %v726
    %773 = vst [vmem:[#allocation7 + $0xf8] sm:$0xff] %v741
    // Predicated region
    $region10: #{tpu_custom_call.1} parent=1 // pred_check
      _
    $region11: #{tpu_custom_call.1} parent=1 // pred_check_branch
      %775 = sbr.rel (0) target = $region13
    $region12: #{tpu_custom_call.1} parent=1 // pred_region
      %777 = vsyncadd [#allocation6], 0
      %s778 = sshll.u32 [#allocation7], 4
      %s779 = int_to_ptr.vmem [resolvable:$true] %s778
      %s780 = sshll.u32 %s2, 4
      %s781 = int_to_ptr.hbm [resolvable:$true] %s780
      %786 = dma.vmem_to_hbm [thread:$0]  %s779, 4096, %s781, [#allocation6], 256, 256, 16
    $region13: #{tpu_custom_call.1} parent=1 // pred_fallthru
      _
    // Predicated region
    $region14: #{tpu_custom_call.1} parent=1 // pred_check
      _
    $region15: #{tpu_custom_call.1} parent=1 // pred_check_branch
      %788 = sbr.rel (0) target = $region17
    $region16: #{tpu_custom_call.1} parent=1 // pred_region
      %790 = dma.done [#allocation6], 4096
    $region17: #{tpu_custom_call.1} parent=1 // pred_fallthru
      _
    %791 = vsyncpa [#allocation5], 1
    %792 = vsyncpa [#allocation6], 1

</llo_original>
